<compile_context>
chip_gen: v5e
topology: v5e:2x2
jax: 0.10.0
libtpu: 0.0.40
codegen_flags: <defaults>
</compile_context>

<pallas_src>
import functools

import jax
import jax.numpy as jnp
from jax.experimental import pallas as pl
from jax.experimental.pallas import tpu as pltpu

_LANES = 128
# Total VMEM budget for the pipelined blocks: 2 pipeline buffers of each of the
# three streams (x, y, out).  24 MiB -> ~4 MiB per-operand blocks for f32,
# which amortizes the ~0.35 us per-grid-step overhead to a few percent even at
# v7x's ~3.2 TB/s, and still leaves headroom under the 32 MiB scoped limit.
_VMEM_BLOCK_BUDGET = 24 * 1024 * 1024
# Scoped-VMEM limit: raises v5e's 16 MiB default; safely below v7x's 64 MiB
# physical VMEM per TensorCore.
_VMEM_LIMIT_BYTES = 32 * 1024 * 1024
# Below this, pallas_call launch overhead dominates and plain XLA add wins.
_MIN_PALLAS_ELEMENTS = 1 << 15


def _add_kernel(a_ref, b_ref, o_ref):
    # Elementwise add on the current VMEM tile (VPU path).  Any dtype
    # promotion / downcast happens in-register, not as a separate HBM pass.
    o_ref[...] = (a_ref[...] + b_ref[...]).astype(o_ref.dtype)


@functools.partial(jax.jit, static_argnames=("force_pallas",))
def pallas_add(x, y, force_pallas=False):
    """Elementwise add with torch.add(input1, input2) semantics (same-shape inputs)."""
    assert x.shape == y.shape, "this kernel implements same-shape add (no broadcasting)"
    out_dtype = jnp.result_type(x.dtype, y.dtype)
    orig_shape = x.shape
    n = x.size

    # XLA fallback: empty tensors, tiny tensors (pure fixed overhead for the
    # Pallas path), and lane-misaligned sizes (a fused XLA add is one HBM pass
    # and strictly beats pad + pallas + slice).
    if n == 0 or n % _LANES != 0 or (n < _MIN_PALLAS_ELEMENTS and not force_pallas):
        # TODO(synk): a masked in-kernel tail (manual DMA + pltpu.store) could
        # keep misaligned sizes on the Pallas path; the XLA add is already
        # single-pass so the win would be marginal.
        return (x + y).astype(out_dtype)

    # ---- lane-dense 2-D view (pure reshape, no extra HBM traffic) ------------
    rows = n // _LANES
    xf = x.reshape(rows, _LANES)
    yf = y.reshape(rows, _LANES)

    # ---- block sizing ---------------------------------------------------------
    out_itemsize = jnp.dtype(out_dtype).itemsize
    itemsizes = (x.dtype.itemsize, y.dtype.itemsize, out_itemsize)
    # Packed-sublane multiple of the narrowest dtype: 8 (32-bit), 16 (16-bit),
    # 32 (8-bit) rows per vreg sublane group.
    sublane_mult = 8 * 4 // min(itemsizes)

    if rows <= sublane_mult:
        # Single block covering the whole array (block dims equal array dims,
        # so no (8,128) divisibility requirement on the row count).
        tile_rows = rows
        grid = (1,)
    else:
        # Budget with the actual per-row byte cost (sum of itemsizes) x 2
        # pipeline buffers, instead of 3 x max(itemsize).
        per_row_bytes = _LANES * sum(itemsizes) * 2
        max_tile_rows = max(
            sublane_mult,
            (_VMEM_BLOCK_BUDGET // per_row_bytes) // sublane_mult * sublane_mult,
        )
        # Split into at least 2 blocks whenever possible so the "parallel"
        # grid axis actually shards across both TensorCores on v7x.
        half_rows = (rows + 1) // 2
        half_rows = (half_rows + sublane_mult - 1) // sublane_mult * sublane_mult
        tile_rows = min(max_tile_rows, half_rows)
        grid = (pl.cdiv(rows, tile_rows),)

    cost = pl.CostEstimate(
        flops=n,
        transcendentals=0,
        bytes_accessed=n * sum(itemsizes),
    )

    out = pl.pallas_call(
        _add_kernel,
        out_shape=jax.ShapeDtypeStruct((rows, _LANES), out_dtype),
        grid_spec=pltpu.PrefetchScalarGridSpec(
            num_scalar_prefetch=0,
            grid=grid,
            in_specs=[
                pl.BlockSpec((tile_rows, _LANES), lambda i: (i, 0)),
                pl.BlockSpec((tile_rows, _LANES), lambda i: (i, 0)),
            ],
            out_specs=pl.BlockSpec((tile_rows, _LANES), lambda i: (i, 0)),
        ),
        compiler_params=pltpu.CompilerParams(
            # Independent blocks -> shard the grid across TensorCores (v7x megacore).
            dimension_semantics=("parallel",),
            vmem_limit_bytes=_VMEM_LIMIT_BYTES,
        ),
        cost_estimate=cost,
    )(xf, yf)

    return out.reshape(orig_shape)


if __name__ == "__main__":
    key = jax.random.PRNGKey(0)
    k1, k2 = jax.random.split(key)

    # Small NCHW-shaped inputs consistent with the module's forward.
    shape = (2, 4, 16, 16)
    input1 = jax.random.normal(k1, shape, dtype=jnp.float32)
    input2 = jax.random.normal(k2, shape, dtype=jnp.float32)

    # force_pallas=True so the demo exercises the kernel even at this tiny
    # shape (the production path would dispatch such sizes straight to XLA).
    out = pallas_add(input1, input2, force_pallas=True)
    jax.block_until_ready(out)

    ref = input1 + input2
    assert out.shape == shape
    assert out.dtype == ref.dtype
    assert jnp.allclose(out, ref, atol=1e-6), "mismatch vs reference add"

    # Multi-block cdiv grid with a ragged (masked) last block.
    k3, k4 = jax.random.split(k2)
    shape2 = (1, 1, 4168, 128)
    a2 = jax.random.normal(k3, shape2, dtype=jnp.float32)
    b2 = jax.random.normal(k4, shape2, dtype=jnp.float32)
    out2 = pallas_add(a2, b2)
    jax.block_until_ready(out2)
    assert jnp.allclose(out2, a2 + b2, atol=1e-6), "mismatch on multi-block path"

    # Lane-misaligned size -> XLA fallback path (single fused HBM pass).
    k5, k6 = jax.random.split(k4)
    shape3 = (3, 5, 7)
    a3 = jax.random.normal(k5, shape3, dtype=jnp.float32)
    b3 = jax.random.normal(k6, shape3, dtype=jnp.float32)
    out3 = pallas_add(a3, b3, force_pallas=True)
    jax.block_until_ready(out3)
    assert jnp.allclose(out3, a3 + b3, atol=1e-6), "mismatch on fallback path"

    print("KERNEL_OK")
</pallas_src>

<mosaic_0001>
module attributes {stable_mosaic.version = 11 : i64} {
  func.func @_add_kernel(%arg0: i32, %arg1: memref<8x128xf32, #tpu.memory_space<vmem>>, %arg2: memref<8x128xf32, #tpu.memory_space<vmem>>, %arg3: memref<8x128xf32, #tpu.memory_space<vmem>>) attributes {dimension_semantics = [#tpu.dimension_semantics<parallel>], iteration_bounds = array<i64: 2>, scalar_prefetch = 0 : i64, scratch_operands = 0 : i64, tpu.core_type = #tpu.core_type<tc>, window_params = [{transform_indices = @transform_0, window_bounds = array<i64: 8, 128>}, {transform_indices = @transform_1, window_bounds = array<i64: 8, 128>}, {transform_indices = @transform_2, window_bounds = array<i64: 8, 128>}]} {
    %c0 = arith.constant 0 : index
    %c0_0 = arith.constant 0 : index
    %0 = vector.load %arg1[%c0, %c0_0] : memref<8x128xf32, #tpu.memory_space<vmem>>, vector<8x128xf32>
    %c0_1 = arith.constant 0 : index
    %c0_2 = arith.constant 0 : index
    %1 = vector.load %arg2[%c0_1, %c0_2] : memref<8x128xf32, #tpu.memory_space<vmem>>, vector<8x128xf32>
    %2 = arith.addf %0, %1 : vector<8x128xf32>
    %c0_3 = arith.constant 0 : index
    %c0_4 = arith.constant 0 : index
    %3 = vector.load %arg3[%c0_3, %c0_4] : memref<8x128xf32, #tpu.memory_space<vmem>>, vector<8x128xf32>
    tpu.vector_store %arg3[%c0_3, %c0_4], %2 {strides = array<i32>} : memref<8x128xf32, #tpu.memory_space<vmem>>, vector<8x128xf32>,
    return
  }
  func.func @transform_0(%arg0: i32) -> (i32, i32) {
    %c0_i32 = arith.constant 0 : i32
    %c0_i32_0 = arith.constant 0 : i32
    return %arg0, %c0_i32 : i32, i32
  }
  func.func @transform_1(%arg0: i32) -> (i32, i32) {
    %c0_i32 = arith.constant 0 : i32
    %c0_i32_0 = arith.constant 0 : i32
    return %arg0, %c0_i32 : i32, i32
  }
  func.func @transform_2(%arg0: i32) -> (i32, i32) {
    %c0_i32 = arith.constant 0 : i32
    %c0_i32_0 = arith.constant 0 : i32
    return %arg0, %c0_i32 : i32, i32
  }
}

</mosaic_0001>

<llo_original>
// kernel: pallas_add.1
$region0: #{pallas_add.1}
  #allocation0 [shape = 'u32[]', space=smem, size = 0x4, offset = 0x4, fixed_abs, tag = 'smem constant byte address 0x4 - core index']
  #allocation1 [shape = 'u32[72,128]{1,0:T(1,128)}', space=vmem, size = 0x9000, scoped, tag = 'internal scratch']
  %s0 = inlined_call_operand.vmem [shape: f32[16,128], index: 0, kind: input, shape index: {}]
  %s1 = inlined_call_operand.vmem [shape: f32[16,128], index: 1, kind: input, shape index: {}]
  %s2 = inlined_call_operand.vmem [shape: f32[16,128], index: 2, kind: output, shape index: {}]
  %s3 = sld [smem:[#allocation0]]
  $region41: #{pallas_add.1} parent=0
    _
  %s5 = ssub.s32 1, %s3
  %s6 = scalar_select 0, %s5, %s3
  loop: start=0, step=1, limit=4
  $region2: #{pallas_add.1} parent=0 // loop_pre_header
    _
  $region3: #{pallas_add.1} parent=0 // loop_header
    %s8 = sphi 0, %s12
    %p9 = scmp.ge.s32.totalorder %s8, 4
    %s18 = sphi 0, %s20
    %s21 = sphi 0, %s18
    %s22 = sphi 0, %s21
    %s38 = sphi 0, %s22
    %s44 = sphi 0, %s46
    %s47 = sphi 0, %s44
    %s48 = sphi 0, %s47
    %s64 = sphi 0, %s48
    %s70 = sphi 0, %s72
    %s73 = sphi 0, %s70
    %s74 = sphi 0, %s73
    %s90 = sphi 0, %s74
  $region4: #{pallas_add.1} parent=0 // loop_header_branch
    %11 = sbr.rel (%p9) target = $region8
  $region5: #{pallas_add.1} parent=0 // loop_body
    %s13 = ssub.s32 %s8, 1
    %s14 = ssub.s32 %s8, 2
    %s15 = sadd.s32 %s8, 1
    %s16 = ssub.s32 %s8, %s15
    %p17 = scmp.eq.s32.totalorder %s16, 0
    %s19 = sadd.s32 %s18, 1
    %s20 = scalar_select %p17, %s18, %s19
    %p23 = pneg %p17
    %p24 = scmp.eq.s32.totalorder %s8, 1
    %p25 = por %p23, %p24
    %p26 = scmp.ne.s32.totalorder %s18, %s21
    %p27 = scmp.eq.s32.totalorder %s8, 0
    %p28 = por %p26, %p27
    %p29 = scmp.ne.s32.totalorder %s18, %s21
    %p30 = scmp.eq.s32.totalorder %s13, 1
    %p31 = por %p29, %p30
    %p32 = scmp.ne.s32.totalorder %s21, %s22
    %p33 = scmp.eq.s32.totalorder %s13, 0
    %p34 = por %p32, %p33
    %p35 = scmp.ne.s32.totalorder %s21, %s22
    %p36 = scmp.eq.s32.totalorder %s14, 1
    %p37 = por %p35, %p36
    %p39 = scmp.ne.s32.totalorder %s22, %s38
    %p40 = scmp.eq.s32.totalorder %s14, 0
    %p41 = por %p39, %p40
    %s42 = ssub.s32 %s8, %s15
    %p43 = scmp.eq.s32.totalorder %s42, 0
    %s45 = sadd.s32 %s44, 1
    %s46 = scalar_select %p43, %s44, %s45
    %p49 = pneg %p43
    %p50 = scmp.eq.s32.totalorder %s8, 1
    %p51 = por %p49, %p50
    %p52 = scmp.ne.s32.totalorder %s44, %s47
    %p53 = scmp.eq.s32.totalorder %s8, 0
    %p54 = por %p52, %p53
    %p55 = scmp.ne.s32.totalorder %s44, %s47
    %p56 = scmp.eq.s32.totalorder %s13, 1
    %p57 = por %p55, %p56
    %p58 = scmp.ne.s32.totalorder %s47, %s48
    %p59 = scmp.eq.s32.totalorder %s13, 0
    %p60 = por %p58, %p59
    %p61 = scmp.ne.s32.totalorder %s47, %s48
    %p62 = scmp.eq.s32.totalorder %s14, 1
    %p63 = por %p61, %p62
    %p65 = scmp.ne.s32.totalorder %s48, %s64
    %p66 = scmp.eq.s32.totalorder %s14, 0
    %p67 = por %p65, %p66
    %s68 = ssub.s32 %s8, %s15
    %p69 = scmp.eq.s32.totalorder %s68, 0
    %s71 = sadd.s32 %s70, 1
    %s72 = scalar_select %p69, %s70, %s71
    %p75 = pneg %p69
    %p76 = scmp.eq.s32.totalorder %s8, 1
    %p77 = por %p75, %p76
    %p78 = scmp.ne.s32.totalorder %s70, %s73
    %p79 = scmp.eq.s32.totalorder %s8, 0
    %p80 = por %p78, %p79
    %p81 = scmp.ne.s32.totalorder %s70, %s73
    %p82 = scmp.eq.s32.totalorder %s13, 1
    %p83 = por %p81, %p82
    %p84 = scmp.ne.s32.totalorder %s73, %s74
    %p85 = scmp.eq.s32.totalorder %s13, 0
    %p86 = por %p84, %p85
    %p87 = scmp.ne.s32.totalorder %s73, %s74
    %p88 = scmp.eq.s32.totalorder %s14, 1
    %p89 = por %p87, %p88
    %p91 = scmp.ne.s32.totalorder %s74, %s90
    %p92 = scmp.eq.s32.totalorder %s14, 0
    %p93 = por %p91, %p92
    %p94 = scmp.le.s32.totalorder 1, %s8
    %p95 = scmp.lt.s32.totalorder %s8, 3
    %p96 = pnand %p94, %p95
    %p97 = pneg %p96
    // Predicated region
    $region9: #{pallas_add.1} parent=5 // pred_check
      _
    $region10: #{pallas_add.1} parent=5 // pred_check_branch
      %99 = sbr.rel (%p96) target = $region12
    $region11: #{pallas_add.1} parent=5 // pred_region
      %s100 = ssub.s32 %s8, 1
    $region12: #{pallas_add.1} parent=5 // pred_fallthru
      _
    %p101 = scmp.lt.s32.totalorder %s8, 2
    // Predicated region
    $region13: #{pallas_add.1} parent=5 // pred_check
      %p102 = pneg %p101
    $region14: #{pallas_add.1} parent=5 // pred_check_branch
      %104 = sbr.rel (%p102) target = $region16
    $region15: #{pallas_add.1} parent=5 // pred_region
      // Predicated region
      $region17: #{pallas_add.1} parent=15 // pred_check
        %p105 = pneg %p28
      $region18: #{pallas_add.1} parent=15 // pred_check_branch
        %107 = sbr.rel (%p105) target = $region20
      $region19: #{pallas_add.1} parent=15 // pred_region
        %p108 = scmp.lt.s32.totalorder %s8, 1
        %s109 = scalar_select %p108, %s8, 1
        %s110 = smul.addr %s109, 8
        %s111 = scalar_lea.vmem %s0, %s110
      $region20: #{pallas_add.1} parent=15 // pred_fallthru
        _
      // Predicated region
      $region21: #{pallas_add.1} parent=15 // pred_check
        %p112 = pneg %p54
      $region22: #{pallas_add.1} parent=15 // pred_check_branch
        %114 = sbr.rel (%p112) target = $region24
      $region23: #{pallas_add.1} parent=15 // pred_region
        %p115 = scmp.lt.s32.totalorder %s8, 1
        %s116 = scalar_select %p115, %s8, 1
        %s117 = smul.addr %s116, 8
        %s118 = scalar_lea.vmem %s1, %s117
      $region24: #{pallas_add.1} parent=15 // pred_fallthru
        _
    $region16: #{pallas_add.1} parent=5 // pred_fallthru
      _
    %p119 = scmp.le.s32.totalorder 1, %s8
    %p120 = scmp.lt.s32.totalorder %s8, 3
    %p121 = pnand %p119, %p120
    %p122 = pneg %p121
    // Predicated region
    $region25: #{pallas_add.1} parent=5 // pred_check
      _
    $region26: #{pallas_add.1} parent=5 // pred_check_branch
      %124 = sbr.rel (%p121) target = $region28
    $region27: #{pallas_add.1} parent=5 // pred_region
      %s125 = ssub.s32 %s8, 1
      %p126 = scmp.lt.s32.totalorder %s13, 1
      %s127 = scalar_select %p126, %s13, 1
      %s128 = smul.addr %s127, 8
      %s129 = scalar_lea.vmem %s0, %s128
      %p130 = pneg %p34
      %p131 = pneg %p31
      %p132 = scmp.lt.s32.totalorder %s13, 1
      %s133 = scalar_select %p132, %s13, 1
      %s134 = smul.addr %s133, 8
      %s135 = scalar_lea.vmem %s1, %s134
      %p136 = pneg %p60
      %p137 = pneg %p57
      %p138 = pneg %p86
      %p139 = pneg %p83
      %p140 = scmp.lt.s32.totalorder %s13, 1
      %s141 = scalar_select %p140, %s13, 1
      %s142 = smul.addr %s141, 8
      %s143 = scalar_lea.vmem %s2, %s142
      %p144 = scmp.lt.s32.totalorder %s13, 1
      %s145 = scalar_select %p144, %s13, 1
      %s146 = smul.addr %s145, 8
      %s147 = scalar_lea.vmem %s0, %s146
      %p148 = scmp.lt.s32.totalorder %s13, 1
      %s149 = scalar_select %p148, %s13, 1
      %s150 = smul.addr %s149, 8
      %s151 = scalar_lea.vmem %s1, %s150
      %p152 = scmp.lt.s32.totalorder %s13, 1
      %s153 = scalar_select %p152, %s13, 1
      %s154 = smul.addr %s153, 8
      %s155 = scalar_lea.vmem %s2, %s154
      %v156 = vld [vmem:[%s147] sm:$0xff]
      %v157 = vld [vmem:[%s151] sm:$0xff]
      %v158 = vadd.f32 %v156, %v157
      %159 = vst [vmem:[%s155] sm:$0xff] %v158
      %p160 = scmp.lt.s32.totalorder %s13, 1
      %s161 = scalar_select %p160, %s13, 1
      %s162 = smul.addr %s161, 8
      %s163 = scalar_lea.vmem %s2, %s162
      // Predicated region
      $region29: #{pallas_add.1} parent=27 // pred_check
        %p164 = pneg %p83
      $region30: #{pallas_add.1} parent=27 // pred_check_branch
        %166 = sbr.rel (%p164) target = $region32
      $region31: #{pallas_add.1} parent=27 // pred_region
        _
      $region32: #{pallas_add.1} parent=27 // pred_fallthru
        _
    $region28: #{pallas_add.1} parent=5 // pred_fallthru
      _
    %p167 = scmp.le.s32.totalorder 2, %s8
    // Predicated region
    $region33: #{pallas_add.1} parent=5 // pred_check
      %p168 = pneg %p167
    $region34: #{pallas_add.1} parent=5 // pred_check_branch
      %170 = sbr.rel (%p168) target = $region36
    $region35: #{pallas_add.1} parent=5 // pred_region
      %s171 = ssub.s32 %s8, 2
      // Predicated region
      $region37: #{pallas_add.1} parent=35 // pred_check
        %p172 = pneg %p89
      $region38: #{pallas_add.1} parent=35 // pred_check_branch
        %174 = sbr.rel (%p172) target = $region40
      $region39: #{pallas_add.1} parent=35 // pred_region
        %p175 = scmp.lt.s32.totalorder %s14, 1
        %s176 = scalar_select %p175, %s14, 1
        %s177 = smul.addr %s176, 8
        %s178 = scalar_lea.vmem %s2, %s177
      $region40: #{pallas_add.1} parent=35 // pred_fallthru
        _
    $region36: #{pallas_add.1} parent=5 // pred_fallthru
      _
  $region6: #{pallas_add.1} parent=0 // loop_footer
    %s12 = sadd.s32 1, %s8
  $region7: #{pallas_add.1} parent=0 // loop_footer_branch
    %7 = sbr.rel target = $region3
  $region8: #{pallas_add.1} parent=0 // loop_exit
    _

</llo_original>
